<compile_context>
chip_gen: v7x
topology: tpu7x:2x2x1
jax: 0.10.0
libtpu: 0.0.40
codegen_flags: <defaults>
</compile_context>

<pallas_src>
import numpy as np
import jax
import jax.numpy as jnp
from jax.experimental import pallas as pl
from jax.experimental.pallas import tpu as pltpu


def _features_linear_kernel(rows_t_ref, wcol_ref, bias_ref, out_ref):
    """One fused step per batch tile.

    rows_t_ref: (F, bt) int32  global embedding rows, batch on the LANE axis
    wcol_ref:   (V, 1)  f32    embedding weight column (output_dim == 1), resident
    bias_ref:   (1, 1)  f32
    out_ref:    (1, bt) f32    lane-dense output (batch on lanes)
    """
    V = wcol_ref.shape[0]
    bt = out_ref.shape[1]
    num_fields = rows_t_ref.shape[0]

    rows_t = rows_t_ref[...]                                       # (F, bt) int32
    vocab_ids = jax.lax.broadcasted_iota(jnp.int32, (V, bt), 0)    # sublane index == vocab id
    w_b = jnp.broadcast_to(wcol_ref[...], (V, bt))                 # lane-broadcast weights

    # Fused one-hot select: for each field, pick the weight of the row it hits.
    # num_fields is tiny & static -> unrolled VPU compares + selects, no gather,
    # no separate "counts" temporary, no MXU.
    # (Each field owns a disjoint vocab range, so restricting the compare to that
    #  range would cut VALU work further; unnecessary at these sizes.)
    contrib = jnp.zeros((V, bt), jnp.float32)
    for f in range(num_fields):
        match = rows_t[f:f + 1, :] == vocab_ids                    # (V, bt) bool
        contrib = contrib + jnp.where(match, w_b, 0.0)

    # Single sublane (XLU) reduce over the vocab axis -> (1, bt), then bias.
    out_ref[...] = jnp.sum(contrib, axis=0, keepdims=True) + bias_ref[...]


def features_linear(x_idx, table, bias, offsets, *, batch_tile=None):
    """Pallas FeaturesLinear forward.

    x_idx:   (B, F) int indices, per-field local ids
    table:   (V, 1) embedding weights, V = sum(field_dims)   (output_dim == 1)
    bias:    (1,)
    offsets: (F,) cumulative field offsets
    Returns: (B, 1) f32
    """
    B, F = x_idx.shape
    V, D = table.shape
    assert D == 1, "kernel implements the module default output_dim=1 (see TODO above)"

    bt = B if batch_tile is None else batch_tile
    assert B % bt == 0 and (bt == B or bt % 128 == 0), \
        "batch tile must divide B and be lane-aligned (multiple of 128) unless it covers B"

    # Fold offsets in the wrapper (tiny XLA add) and put batch on the lane axis.
    rows_t = (x_idx.astype(jnp.int32) + offsets.astype(jnp.int32)[None, :]).T   # (F, B)
    wcol = table.astype(jnp.float32)                                            # (V, 1)
    bias2d = bias.reshape(1, 1).astype(jnp.float32)

    out_1b = pl.pallas_call(
        _features_linear_kernel,
        out_shape=jax.ShapeDtypeStruct((1, B), jnp.float32),
        grid=(B // bt,),
        in_specs=[
            pl.BlockSpec((F, bt), lambda i: (0, i)),   # row indices: per batch tile
            pl.BlockSpec((V, 1), lambda i: (0, 0)),    # weight column: resident (DMA'd once)
            pl.BlockSpec((1, 1), lambda i: (0, 0)),    # bias
        ],
        out_specs=pl.BlockSpec((1, bt), lambda i: (0, i)),
        compiler_params=pltpu.CompilerParams(
            dimension_semantics=("parallel",)),        # batch tiles shard across v7x's 2 TCs
    )(rows_t, wcol, bias2d)

    # (1, B) -> (B, 1): pure metadata reshape (one dim is 1), matches the module output.
    return out_1b.reshape(B, 1)


def features_linear_ref(x_idx, table, bias, offsets):
    """Pure-JAX reference of the PyTorch forward (for validation)."""
    rows = x_idx + offsets[None, :]
    return jnp.take(table, rows, axis=0).sum(axis=1) + bias[None, :]


if __name__ == "__main__":
    key = jax.random.PRNGKey(0)

    # Small shapes consistent with the module: (batch, num_fields) long tensor of local ids.
    field_dims = [7, 9, 11, 5]          # sum(field_dims) = 32 embedding rows
    output_dim = 1
    B = 16
    F = len(field_dims)
    V = sum(field_dims)
    offsets_np = np.array((0, *np.cumsum(field_dims)[:-1]), dtype=np.int32)
    offsets = jnp.asarray(offsets_np)

    k_tab, k_idx = jax.random.split(key)
    # nn.Embedding default init ~ N(0,1); bias init zeros (torch.zeros)
    table = jax.random.normal(k_tab, (V, output_dim), jnp.float32)
    bias = jnp.zeros((output_dim,), jnp.float32)
    x_idx = jnp.stack(
        [jax.random.randint(k, (B,), 0, fd)
         for k, fd in zip(jax.random.split(k_idx, F), field_dims)],
        axis=1).astype(jnp.int32)

    # Largest tiles for the demo: single grid step (bt = B), table fully resident.
    fwd = jax.jit(lambda xi: features_linear(xi, table, bias, offsets))
    y = fwd(x_idx)
    jax.block_until_ready(y)

    y_ref = features_linear_ref(x_idx, table, bias, offsets)

    assert y.shape == (B, output_dim), y.shape
    assert bool(jnp.allclose(y, y_ref, atol=1e-4, rtol=1e-4)), (y, y_ref)
    print("KERNEL_OK")
</pallas_src>

<mosaic_0001>
module attributes {stable_mosaic.version = 11 : i64} {
  func.func @_features_linear_kernel(%arg0: i32, %arg1: memref<4x16xi32, #tpu.memory_space<vmem>>, %arg2: memref<32x1xf32, #tpu.memory_space<vmem>>, %arg3: memref<1x1xf32, #tpu.memory_space<vmem>>, %arg4: memref<1x16xf32, #tpu.memory_space<vmem>>) attributes {dimension_semantics = [#tpu.dimension_semantics<parallel>], iteration_bounds = array<i64: 1>, scalar_prefetch = 0 : i64, scratch_operands = 0 : i64, tpu.core_type = #tpu.core_type<tc>, window_params = [{transform_indices = @transform_0, window_bounds = array<i64: 4, 16>}, {pipeline_mode = #tpu.pipeline_mode<synchronous>, transform_indices = @transform_1, window_bounds = array<i64: 32, 1>}, {pipeline_mode = #tpu.pipeline_mode<synchronous>, transform_indices = @transform_2, window_bounds = array<i64: 1, 1>}, {transform_indices = @transform_3, window_bounds = array<i64: 1, 16>}]} {
    %c0 = arith.constant 0 : index
    %c0_0 = arith.constant 0 : index
    %0 = vector.load %arg1[%c0, %c0_0] : memref<4x16xi32, #tpu.memory_space<vmem>>, vector<4x16xi32>
    %1 = tpu.iota {dimensions = array<i32: 0>} : vector<32x16xi32>
    %c0_1 = arith.constant 0 : index
    %c0_2 = arith.constant 0 : index
    %2 = vector.load %arg2[%c0_1, %c0_2] : memref<32x1xf32, #tpu.memory_space<vmem>>, vector<32x1xf32>
    %3 = vector.shape_cast %2 : vector<32x1xf32> to vector<32x1xf32>
    %4 = vector.broadcast %3 : vector<32x1xf32> to vector<32x16xf32>
    %cst = arith.constant 0.000000e+00 : f32
    %5 = vector.broadcast %cst : f32 to vector<32x16xf32>
    %6 = vector.extract_strided_slice %0 {offsets = [0, 0], sizes = [1, 16], strides = [1, 1]} : vector<4x16xi32> to vector<1x16xi32>
    %7 = vector.broadcast %6 : vector<1x16xi32> to vector<32x16xi32>
    %8 = arith.cmpi eq, %7, %1 : vector<32x16xi32>
    %cst_3 = arith.constant 0.000000e+00 : f32
    %9 = vector.broadcast %cst_3 : f32 to vector<32x16xf32>
    %10 = arith.select %8, %4, %9 : vector<32x16xi1>, vector<32x16xf32>
    %11 = arith.addf %5, %10 : vector<32x16xf32>
    %12 = vector.extract_strided_slice %0 {offsets = [1, 0], sizes = [1, 16], strides = [1, 1]} : vector<4x16xi32> to vector<1x16xi32>
    %13 = vector.broadcast %12 : vector<1x16xi32> to vector<32x16xi32>
    %14 = arith.cmpi eq, %13, %1 : vector<32x16xi32>
    %cst_4 = arith.constant 0.000000e+00 : f32
    %15 = vector.broadcast %cst_4 : f32 to vector<32x16xf32>
    %16 = arith.select %14, %4, %15 : vector<32x16xi1>, vector<32x16xf32>
    %17 = arith.addf %11, %16 : vector<32x16xf32>
    %18 = vector.extract_strided_slice %0 {offsets = [2, 0], sizes = [1, 16], strides = [1, 1]} : vector<4x16xi32> to vector<1x16xi32>
    %19 = vector.broadcast %18 : vector<1x16xi32> to vector<32x16xi32>
    %20 = arith.cmpi eq, %19, %1 : vector<32x16xi32>
    %cst_5 = arith.constant 0.000000e+00 : f32
    %21 = vector.broadcast %cst_5 : f32 to vector<32x16xf32>
    %22 = arith.select %20, %4, %21 : vector<32x16xi1>, vector<32x16xf32>
    %23 = arith.addf %17, %22 : vector<32x16xf32>
    %24 = vector.extract_strided_slice %0 {offsets = [3, 0], sizes = [1, 16], strides = [1, 1]} : vector<4x16xi32> to vector<1x16xi32>
    %25 = vector.broadcast %24 : vector<1x16xi32> to vector<32x16xi32>
    %26 = arith.cmpi eq, %25, %1 : vector<32x16xi32>
    %cst_6 = arith.constant 0.000000e+00 : f32
    %27 = vector.broadcast %cst_6 : f32 to vector<32x16xf32>
    %28 = arith.select %26, %4, %27 : vector<32x16xi1>, vector<32x16xf32>
    %29 = arith.addf %23, %28 : vector<32x16xf32>
    %cst_7 = arith.constant dense<0.000000e+00> : vector<16xf32>
    %30 = vector.multi_reduction <add>, %29, %cst_7 [0] : vector<32x16xf32> to vector<16xf32>
    %31 = vector.shape_cast %30 : vector<16xf32> to vector<1x16xf32>
    %c0_8 = arith.constant 0 : index
    %c0_9 = arith.constant 0 : index
    %32 = vector.load %arg3[%c0_8, %c0_9] : memref<1x1xf32, #tpu.memory_space<vmem>>, vector<1x1xf32>
    %33 = vector.broadcast %32 : vector<1x1xf32> to vector<1x16xf32>
    %34 = arith.addf %31, %33 : vector<1x16xf32>
    %c0_10 = arith.constant 0 : index
    %c0_11 = arith.constant 0 : index
    %35 = vector.load %arg4[%c0_10, %c0_11] : memref<1x16xf32, #tpu.memory_space<vmem>>, vector<1x16xf32>
    tpu.vector_store %arg4[%c0_10, %c0_11], %34 {strides = array<i32>} : memref<1x16xf32, #tpu.memory_space<vmem>>, vector<1x16xf32>,
    return
  }
  func.func @transform_0(%arg0: i32) -> (i32, i32) {
    %c0_i32 = arith.constant 0 : i32
    %c0_i32_0 = arith.constant 0 : i32
    return %c0_i32, %arg0 : i32, i32
  }
  func.func @transform_1(%arg0: i32) -> (i32, i32) {
    %c0_i32 = arith.constant 0 : i32
    %c0_i32_0 = arith.constant 0 : i32
    %c0_i32_1 = arith.constant 0 : i32
    return %c0_i32, %c0_i32_0 : i32, i32
  }
  func.func @transform_2(%arg0: i32) -> (i32, i32) {
    %c0_i32 = arith.constant 0 : i32
    %c0_i32_0 = arith.constant 0 : i32
    %c0_i32_1 = arith.constant 0 : i32
    return %c0_i32, %c0_i32_0 : i32, i32
  }
  func.func @transform_3(%arg0: i32) -> (i32, i32) {
    %c0_i32 = arith.constant 0 : i32
    %c0_i32_0 = arith.constant 0 : i32
    return %c0_i32, %arg0 : i32, i32
  }
}

</mosaic_0001>

<llo_original>
// kernel: _lambda_.1
$region0: #{_lambda_.1}
  #allocation0 [shape = 'u32[]', space=smem, size = 0x4, offset = 0x4, fixed_abs, tag = 'smem constant byte address 0x4 - core index']
  #allocation1 [shape = 'u32[144,128]{1,0:T(1,128)}', space=vmem, size = 0x12000, scoped, tag = 'internal scratch']
  #allocation2 [shape = 'f32[1,1]{1,0:T(1,128)S(1)}', space=vmem, size = 0x200, scoped, tag = 'scoped memory for _lambda_.1']
  %s0 = inlined_call_operand.vmem [shape: s32[4,16], index: 0, kind: input, shape index: {}]
  %s1 = inlined_call_operand.hbm [shape: f32[32,1], index: 1, kind: input, shape index: {}]
  %s2 = inlined_call_operand.<no memory space> [shape: f32[1,1], index: 2, kind: input, shape index: {}]
  %s3 = inlined_call_operand.hbm [shape: f32[1,16], index: 3, kind: output, shape index: {}]
  %s4 = sld [smem:[#allocation0]]
  $region26: #{_lambda_.1} parent=0
    _
  %s6 = ssub.s32 1, %s4
  %s7 = scalar_select 0, %s6, %s4
  %v8 = vstv %s2
  %9 = vst [vmem:[#allocation2] sm:$0x1] %v8
  $region1: #{_lambda_.1} parent=0
    #allocation3 [shape = 'u8[16384]{0}', space=vmem, size = 0x4000, scoped, tag = 'input window, operand 1, single buffered']
    #allocation4 [shape = 's32[1]{0}', space=sflag, size = 0x4, scoped, tag = 'scoped memory for _lambda_.1']
    #allocation5 [shape = 's32[1]{0}', space=sflag, size = 0x4, scoped, tag = 'scoped memory for _lambda_.1']
    #allocation6 [shape = 'u8[512]{0}', space=vmem, size = 0x400, scoped, tag = 'output window, operand 0, single buffered']
    %10 = vsyncpa [#allocation4], 0
    %11 = vsyncpa [#allocation5], 0
    // Predicated region
    $region2: #{_lambda_.1} parent=1 // pred_check
      _
    $region3: #{_lambda_.1} parent=1 // pred_check_branch
      %13 = sbr.rel (0) target = $region5
    $region4: #{_lambda_.1} parent=1 // pred_region
      _
    $region5: #{_lambda_.1} parent=1 // pred_fallthru
      _
    // Predicated region
    $region6: #{_lambda_.1} parent=1 // pred_check
      _
    $region7: #{_lambda_.1} parent=1 // pred_check_branch
      %15 = sbr.rel (0) target = $region9
    $region8: #{_lambda_.1} parent=1 // pred_region
      %s17 = ssub.s32 512, 512
      %18 = vsyncadd [#allocation4], %s17
      %s19 = sshll.u32 [#allocation3], 4
      %s20 = int_to_ptr.vmem [resolvable:$true] %s19
      %25 = dma.hbm_to_vmem [thread:$0]  %s1, 512, %s20, [#allocation4], 128, 128, 8
    $region9: #{_lambda_.1} parent=1 // pred_fallthru
      _
    // Predicated region
    $region10: #{_lambda_.1} parent=1 // pred_check
      _
    $region11: #{_lambda_.1} parent=1 // pred_check_branch
      %27 = sbr.rel (0) target = $region13
    $region12: #{_lambda_.1} parent=1 // pred_region
      _
    $region13: #{_lambda_.1} parent=1 // pred_fallthru
      _
    // Predicated region
    $region14: #{_lambda_.1} parent=1 // pred_check
      _
    $region15: #{_lambda_.1} parent=1 // pred_check_branch
      %29 = sbr.rel (0) target = $region17
    $region16: #{_lambda_.1} parent=1 // pred_region
      %30 = dma.done [#allocation4], 512
    $region17: #{_lambda_.1} parent=1 // pred_fallthru
      _
    %v31 = vld [vmem:[%s0] sm:$0xf]
    %v32 = vlaneseq
    %v33 = vshrl.u32 %v32, 7
    %v34 = vadd.s32 %v33, 8
    %v35 = vadd.s32 %v33, 16
    %v36 = vadd.s32 %v33, 24
    %v37 = vld [vmem:[#allocation3] sm:$0xff]
    %v38 = vld [vmem:[#allocation3 + $0x8] sm:$0xff]
    %v39 = vld [vmem:[#allocation3 + $0x10] sm:$0xff]
    %v40 = vld [vmem:[#allocation3 + $0x18] sm:$0xff]
    %42 = vset.pattern.permute.xlu0 0
    %43 = vperm.xlu0 %42, %v37
    %v44 = vpop.permute.xlu0 %43
    %47 = vset.pattern.permute.xlu0 0
    %48 = vperm.xlu0 %47, %v38
    %v49 = vpop.permute.xlu0 %48
    %52 = vset.pattern.permute.xlu0 0
    %53 = vperm.xlu0 %52, %v39
    %v54 = vpop.permute.xlu0 %53
    %57 = vset.pattern.permute.xlu0 0
    %58 = vperm.xlu0 %57, %v40
    %v59 = vpop.permute.xlu0 %58
    %v61 = vlaneseq
    %v62 = vshrl.u32 %v61, 7
    %v63 = vsub.s32 0, %v62
    %v64 = vrot.slane %v31, %v63
    %vm65 = vcmp.eq.s32.totalorder %v64, %v33
    %vm66 = vcmp.eq.s32.totalorder %v64, %v34
    %vm67 = vcmp.eq.s32.totalorder %v64, %v35
    %vm68 = vcmp.eq.s32.totalorder %v64, %v36
    %v69 = vsel %vm65, %v44, 0.0
    %v70 = vsel %vm66, %v49, 0.0
    %v71 = vsel %vm67, %v54, 0.0
    %v72 = vsel %vm68, %v59, 0.0
    %v73 = vadd.f32 %v69, 0.0
    %v74 = vadd.f32 %v70, 0.0
    %v75 = vadd.f32 %v71, 0.0
    %v76 = vadd.f32 %v72, 0.0
    %v77 = vlaneseq
    %v78 = vshrl.u32 %v77, 7
    %v79 = vsub.s32 1, %v78
    %v80 = vrot.slane %v31, %v79
    %vm81 = vcmp.eq.s32.totalorder %v80, %v33
    %vm82 = vcmp.eq.s32.totalorder %v80, %v34
    %vm83 = vcmp.eq.s32.totalorder %v80, %v35
    %vm84 = vcmp.eq.s32.totalorder %v80, %v36
    %v85 = vsel %vm81, %v44, 0.0
    %v86 = vsel %vm82, %v49, 0.0
    %v87 = vsel %vm83, %v54, 0.0
    %v88 = vsel %vm84, %v59, 0.0
    %v89 = vadd.f32 %v73, %v85
    %v90 = vadd.f32 %v74, %v86
    %v91 = vadd.f32 %v75, %v87
    %v92 = vadd.f32 %v76, %v88
    %v93 = vlaneseq
    %v94 = vshrl.u32 %v93, 7
    %v95 = vsub.s32 2, %v94
    %v96 = vrot.slane %v31, %v95
    %vm97 = vcmp.eq.s32.totalorder %v96, %v33
    %vm98 = vcmp.eq.s32.totalorder %v96, %v34
    %vm99 = vcmp.eq.s32.totalorder %v96, %v35
    %vm100 = vcmp.eq.s32.totalorder %v96, %v36
    %v101 = vsel %vm97, %v44, 0.0
    %v102 = vsel %vm98, %v49, 0.0
    %v103 = vsel %vm99, %v54, 0.0
    %v104 = vsel %vm100, %v59, 0.0
    %v105 = vadd.f32 %v89, %v101
    %v106 = vadd.f32 %v90, %v102
    %v107 = vadd.f32 %v91, %v103
    %v108 = vadd.f32 %v92, %v104
    %v109 = vlaneseq
    %v110 = vshrl.u32 %v109, 7
    %v111 = vsub.s32 3, %v110
    %v112 = vrot.slane %v31, %v111
    %vm113 = vcmp.eq.s32.totalorder %v112, %v33
    %vm114 = vcmp.eq.s32.totalorder %v112, %v34
    %vm115 = vcmp.eq.s32.totalorder %v112, %v35
    %vm116 = vcmp.eq.s32.totalorder %v112, %v36
    %v117 = vsel %vm113, %v44, 0.0
    %v118 = vsel %vm114, %v49, 0.0
    %v119 = vsel %vm115, %v54, 0.0
    %v120 = vsel %vm116, %v59, 0.0
    %v121 = vadd.f32 %v105, %v117
    %v122 = vadd.f32 %v106, %v118
    %v123 = vadd.f32 %v107, %v119
    %v124 = vadd.f32 %v108, %v120
    %vm125 = vcmask 130048
    %v126 = vsel %vm125, %v121, 0.0
    %v127 = vsel %vm125, %v122, 0.0
    %v128 = vadd.f32 %v126, %v127
    %v129 = vsel %vm125, %v123, 0.0
    %v130 = vadd.f32 %v128, %v129
    %v131 = vsel %vm125, %v124, 0.0
    %v132 = vadd.f32 %v130, %v131
    %v133 = vrot.slane %v132, 4
    %v134 = vadd.f32 %v132, %v133
    %v135 = vrot.slane %v134, 2
    %v136 = vadd.f32 %v134, %v135
    %v137 = vrot.slane %v136, 1
    %v138 = vadd.f32 %v136, %v137
    %v139 = vld [vmem:[#allocation2] sm:$0x1]
    %141 = vset.pattern.permute.xlu0 0
    %142 = vperm.xlu0 %141, %v139
    %v143 = vpop.permute.xlu0 %142
    %v145 = vlaneseq
    %v146 = vshrl.u32 %v145, 7
    %v147 = vsub.s32 0, %v146
    %v148 = vrot.slane %v143, %v147
    %v149 = vadd.f32 %v138, %v148
    %vm150 = vcmask 122880
    %151 = vst.msk [vmem:[#allocation6] sm:$0x1] %vm150, %v149
    // Predicated region
    $region18: #{_lambda_.1} parent=1 // pred_check
      _
    $region19: #{_lambda_.1} parent=1 // pred_check_branch
      %153 = sbr.rel (0) target = $region21
    $region20: #{_lambda_.1} parent=1 // pred_region
      %s155 = ssub.s32 16, 16
      %156 = vsyncadd [#allocation5], %s155
      %s158 = sshll.u32 [#allocation6], 4
      %s159 = int_to_ptr.vmem [resolvable:$true] %s158
      %161 = dma.vmem_to_hbm [thread:$0]  %s159, 16, %s3, [#allocation5]
    $region21: #{_lambda_.1} parent=1 // pred_fallthru
      _
    // Predicated region
    $region22: #{_lambda_.1} parent=1 // pred_check
      _
    $region23: #{_lambda_.1} parent=1 // pred_check_branch
      %163 = sbr.rel (0) target = $region25
    $region24: #{_lambda_.1} parent=1 // pred_region
      %164 = dma.done [#allocation5], 16
    $region25: #{_lambda_.1} parent=1 // pred_fallthru
      _
    %165 = vsyncpa [#allocation4], 1
    %166 = vsyncpa [#allocation5], 1

</llo_original>
